<compile_context>
chip_gen: v5e
topology: v5e:2x2
jax: 0.10.0
libtpu: 0.0.40
codegen_flags: <defaults>
</compile_context>

<pallas_src>
import math

import jax
import jax.numpy as jnp
from jax import lax
from jax.experimental import pallas as pl
from jax.experimental.pallas import tpu as pltpu


def _round_up(x, m):
    return ((x + m - 1) // m) * m


def encoder_kernel(adj_ref, hk_ref, hi_ref, w_ref, b_ref, out_ref, acc_ref):
    """Grid = (row_tiles, k_tiles); k (reduction over adjacency cols) is last."""
    k = pl.program_id(1)

    @pl.when(k == 0)
    def _():
        acc_ref[...] = jnp.zeros_like(acc_ref)

    # Partial Ahat @ h : (tm, tk) bf16 x (tk, DIN_PAD) bf16 -> f32 accumulate.
    acc_ref[...] += jnp.dot(adj_ref[...], hk_ref[...],
                            preferred_element_type=jnp.float32)

    @pl.when(k == pl.num_programs(1) - 1)
    def _():
        # concat([h, Ahat@h]) along lanes (128-aligned) -> single fused matmul.
        xcat = jnp.concatenate(
            [hi_ref[...], acc_ref[...].astype(jnp.bfloat16)], axis=-1)
        out = jnp.dot(xcat, w_ref[...],
                      preferred_element_type=jnp.float32) + b_ref[...]
        # L2 normalize; padded output columns are exactly zero, so the reduce
        # over the padded lane extent equals the true row norm.
        sumsq = jnp.sum(out * out, axis=-1, keepdims=True)
        out_ref[...] = (out * lax.rsqrt(sumsq)).astype(out_ref.dtype)


def encoder_forward(adj_hat, h, w0, w1, b, *, tm=256, tk=1024):
    """adj_hat: (N, N) normalized adjacency; h: (N, Din); w0/w1: (Din, Dh); b: (1, Dh)."""
    n, din = h.shape
    dh = w0.shape[1]

    din_pad = _round_up(din, 128)
    dh_pad = _round_up(dh, 128)

    # Clamp tiles to the (padded) problem size; keep sublane/lane alignment.
    tm = min(tm, _round_up(n, 16))
    tk = min(tk, _round_up(n, 128))
    n_pad = _round_up(n, math.lcm(tm, tk))

    # Zero-pad to lane/sublane-friendly shapes (numerically neutral: the extra
    # rows/cols are zero and are multiplied by zero / sliced away afterwards).
    adj_p = jnp.zeros((n_pad, n_pad), jnp.float32).at[:n, :n].set(adj_hat)
    h_p = jnp.zeros((n_pad, din_pad), jnp.float32).at[:n, :din].set(h)
    w_p = (jnp.zeros((2 * din_pad, dh_pad), jnp.float32)
           .at[:din, :dh].set(w0)
           .at[din_pad:din_pad + din, :dh].set(w1))
    b_p = jnp.zeros((1, dh_pad), jnp.float32).at[:, :dh].set(b)

    # Stream the MXU operands as bf16 (halves HBM traffic on the N^2 adj term).
    adj_p = adj_p.astype(jnp.bfloat16)
    h_p = h_p.astype(jnp.bfloat16)
    w_p = w_p.astype(jnp.bfloat16)

    grid = (n_pad // tm, n_pad // tk)

    # VMEM footprint of one grid step (pipelined operands are double-buffered).
    tile_bytes = (2 * (tm * tk * 2)                 # adj tile (bf16)
                  + 2 * (tk * din_pad * 2)          # h tile (reduction rows)
                  + 2 * (tm * din_pad * 2)          # h tile (output rows)
                  + 2 * (2 * din_pad * dh_pad * 2)  # fused weight (bf16)
                  + 2 * (dh_pad * 4)                # bias
                  + 2 * (tm * dh_pad * 4)           # output tile
                  + tm * din_pad * 4)               # accumulator scratch
    vmem_limit = int(min(100 * 1024 * 1024,
                         max(8 * 1024 * 1024, 2 * tile_bytes)))

    cost = pl.CostEstimate(
        flops=2 * n_pad * n_pad * din_pad + 2 * n_pad * (2 * din_pad) * dh_pad,
        transcendentals=n_pad,
        bytes_accessed=(n_pad * n_pad * 2 + 2 * n_pad * din_pad * 2
                        + 2 * din_pad * dh_pad * 2 + dh_pad * 4
                        + n_pad * dh_pad * 4),
    )

    out_pad = pl.pallas_call(
        encoder_kernel,
        out_shape=jax.ShapeDtypeStruct((n_pad, dh_pad), jnp.float32),
        grid_spec=pltpu.PrefetchScalarGridSpec(
            num_scalar_prefetch=0,
            grid=grid,
            in_specs=[
                pl.BlockSpec((tm, tk), lambda i, k: (i, k)),               # adj
                pl.BlockSpec((tk, din_pad), lambda i, k: (k, 0)),          # h (reduction rows)
                pl.BlockSpec((tm, din_pad), lambda i, k: (i, 0)),          # h (output rows)
                pl.BlockSpec((2 * din_pad, dh_pad), lambda i, k: (0, 0)),  # fused W
                pl.BlockSpec((1, dh_pad), lambda i, k: (0, 0)),            # bias
            ],
            out_specs=pl.BlockSpec((tm, dh_pad), lambda i, k: (i, 0)),
            scratch_shapes=[pltpu.VMEM((tm, din_pad), jnp.float32)],
        ),
        compiler_params=pltpu.CompilerParams(
            dimension_semantics=("parallel", "arbitrary"),
            vmem_limit_bytes=vmem_limit,
        ),
        cost_estimate=cost,
    )(adj_p, h_p, h_p, w_p, b_p)

    return out_pad[:n, :dh]


def reference_forward(adj_hat, h, w0, w1, b):
    # Reference matching the kernel's precision path: bf16-rounded MXU
    # operands, f32 accumulation, accumulator rounded to bf16 before the
    # fused projection, f32 bias add + L2 normalize.
    bf = lambda x: x.astype(jnp.bfloat16).astype(jnp.float32)
    adj_b, h_b, w0_b, w1_b = bf(adj_hat), bf(h), bf(w0), bf(w1)
    ah_b = bf(adj_b @ h_b)
    out = h_b @ w0_b + ah_b @ w1_b + b
    norm = jnp.sqrt(jnp.sum(out ** 2, axis=1, keepdims=True))
    return out / norm


if __name__ == "__main__":
    key = jax.random.PRNGKey(0)
    k_h, k_adj, k_w, k_b = jax.random.split(key, 4)

    # Small synthetic graph: N nodes, in_dim features, hidden_dim output.
    N, in_dim, hidden_dim = 16, 8, 32

    # Node features (corresponds to g.ndata['h']).
    h = jax.random.normal(k_h, (N, in_dim), dtype=jnp.float32)

    # Random undirected adjacency with self-loops, then symmetric normalization
    # Ahat = D^{-1/2} A D^{-1/2}  (what DGL's TAGConv applies).
    a_rand = jax.random.uniform(k_adj, (N, N)) < 0.3
    A = jnp.logical_or(a_rand, a_rand.T).astype(jnp.float32)
    A = A + jnp.eye(N, dtype=jnp.float32)            # self-loops -> no zero degree
    deg = jnp.sum(A, axis=1)
    d_inv_sqrt = 1.0 / jnp.sqrt(deg)
    adj_hat = A * d_inv_sqrt[:, None] * d_inv_sqrt[None, :]

    # TAGConv k=1 linear layer: weight (2*in_dim, hidden_dim), bias (hidden_dim).
    fan_in, fan_out = 2 * in_dim, hidden_dim
    limit = jnp.sqrt(6.0 / (fan_in + fan_out))
    W = jax.random.uniform(k_w, (2 * in_dim, hidden_dim),
                           minval=-limit, maxval=limit, dtype=jnp.float32)
    b = jax.random.uniform(k_b, (1, hidden_dim),
                           minval=-0.1, maxval=0.1, dtype=jnp.float32)
    W0, W1 = W[:in_dim], W[in_dim:]   # concat([h, Ah]) @ W == h@W0 + Ah@W1

    out = encoder_forward(adj_hat, h, W0, W1, b)
    jax.block_until_ready(out)

    ref = reference_forward(adj_hat, h, W0, W1, b)
    assert out.shape == (N, hidden_dim)
    assert jnp.allclose(out, ref, atol=5e-3, rtol=5e-3), "mismatch vs reference"
    # rows should be unit L2 norm (exact property of the kernel's normalize)
    assert jnp.allclose(jnp.linalg.norm(out, axis=1), 1.0, atol=1e-3)

    print("KERNEL_OK")
</pallas_src>

<mosaic_0001>
module attributes {stable_mosaic.version = 11 : i64} {
  func.func @encoder_kernel(%arg0: i32, %arg1: i32, %arg2: memref<16x128xbf16, #tpu.memory_space<vmem>>, %arg3: memref<128x128xbf16, #tpu.memory_space<vmem>>, %arg4: memref<16x128xbf16, #tpu.memory_space<vmem>>, %arg5: memref<256x128xbf16, #tpu.memory_space<vmem>>, %arg6: memref<1x128xf32, #tpu.memory_space<vmem>>, %arg7: memref<16x128xf32, #tpu.memory_space<vmem>>, %arg8: memref<16x128xf32, #tpu.memory_space<vmem>>) attributes {dimension_semantics = [#tpu.dimension_semantics<parallel>, #tpu.dimension_semantics<arbitrary>], iteration_bounds = array<i64: 8, 1>, scalar_prefetch = 0 : i64, scratch_operands = 1 : i64, tpu.core_type = #tpu.core_type<tc>, window_params = [{transform_indices = @transform_0, window_bounds = array<i64: 16, 128>}, {transform_indices = @transform_1, window_bounds = array<i64: 128, 128>}, {transform_indices = @transform_2, window_bounds = array<i64: 16, 128>}, {pipeline_mode = #tpu.pipeline_mode<synchronous>, transform_indices = @transform_3, window_bounds = array<i64: 256, 128>}, {pipeline_mode = #tpu.pipeline_mode<synchronous>, transform_indices = @transform_4, window_bounds = array<i64: 1, 128>}, {transform_indices = @transform_5, window_bounds = array<i64: 16, 128>}]} {
    %c0_i32 = arith.constant 0 : i32
    %0 = arith.cmpi eq, %arg1, %c0_i32 : i32
    %1 = arith.extui %0 : i1 to i32
    %c0_i32_0 = arith.constant 0 : i32
    %2 = arith.cmpi ne, %1, %c0_i32_0 : i32
    scf.if %2 {
      %cst_10 = arith.constant 0.000000e+00 : f32
      %12 = vector.broadcast %cst_10 : f32 to vector<16x128xf32>
      %c0_11 = arith.constant 0 : index
      %c0_12 = arith.constant 0 : index
      %13 = vector.load %arg8[%c0_11, %c0_12] : memref<16x128xf32, #tpu.memory_space<vmem>>, vector<16x128xf32>
      tpu.vector_store %arg8[%c0_11, %c0_12], %12 {strides = array<i32>} : memref<16x128xf32, #tpu.memory_space<vmem>>, vector<16x128xf32>,
    } else {
    }
    %c0 = arith.constant 0 : index
    %c0_1 = arith.constant 0 : index
    %3 = vector.load %arg8[%c0, %c0_1] : memref<16x128xf32, #tpu.memory_space<vmem>>, vector<16x128xf32>
    %c0_2 = arith.constant 0 : index
    %c0_3 = arith.constant 0 : index
    %4 = vector.load %arg2[%c0_2, %c0_3] : memref<16x128xbf16, #tpu.memory_space<vmem>>, vector<16x128xbf16>
    %c0_4 = arith.constant 0 : index
    %c0_5 = arith.constant 0 : index
    %5 = vector.load %arg3[%c0_4, %c0_5] : memref<128x128xbf16, #tpu.memory_space<vmem>>, vector<128x128xbf16>
    %cst = arith.constant dense<0.000000e+00> : vector<16x128xf32>
    %6 = tpu.matmul %4, %5, %cst {dimension_numbers = #tpu.dot_dimension_numbers<[1], [0], [0], [1], [0, 0, 1, 1], [], []>} : vector<16x128xbf16>, vector<128x128xbf16>, vector<16x128xf32> -> vector<16x128xf32>
    %7 = arith.addf %3, %6 : vector<16x128xf32>
    %c0_6 = arith.constant 0 : index
    %c0_7 = arith.constant 0 : index
    %8 = vector.load %arg8[%c0_6, %c0_7] : memref<16x128xf32, #tpu.memory_space<vmem>>, vector<16x128xf32>
    tpu.vector_store %arg8[%c0_6, %c0_7], %7 {strides = array<i32>} : memref<16x128xf32, #tpu.memory_space<vmem>>, vector<16x128xf32>,
    %c0_i32_8 = arith.constant 0 : i32
    %9 = arith.cmpi eq, %arg1, %c0_i32_8 : i32
    %10 = arith.extui %9 : i1 to i32
    %c0_i32_9 = arith.constant 0 : i32
    %11 = arith.cmpi ne, %10, %c0_i32_9 : i32
    scf.if %11 {
      %c0_10 = arith.constant 0 : index
      %c0_11 = arith.constant 0 : index
      %12 = vector.load %arg4[%c0_10, %c0_11] : memref<16x128xbf16, #tpu.memory_space<vmem>>, vector<16x128xbf16>
      %c0_12 = arith.constant 0 : index
      %c0_13 = arith.constant 0 : index
      %13 = vector.load %arg8[%c0_12, %c0_13] : memref<16x128xf32, #tpu.memory_space<vmem>>, vector<16x128xf32>
      %14 = arith.truncf %13 : vector<16x128xf32> to vector<16x128xbf16>
      %15 = tpu.concatenate %12, %14 in 1 : vector<16x128xbf16>, vector<16x128xbf16> -> vector<16x256xbf16>
      %c0_14 = arith.constant 0 : index
      %c0_15 = arith.constant 0 : index
      %16 = vector.load %arg5[%c0_14, %c0_15] : memref<256x128xbf16, #tpu.memory_space<vmem>>, vector<256x128xbf16>
      %cst_16 = arith.constant dense<0.000000e+00> : vector<16x128xf32>
      %17 = tpu.matmul %15, %16, %cst_16 {dimension_numbers = #tpu.dot_dimension_numbers<[1], [0], [0], [1], [0, 0, 1, 1], [], []>} : vector<16x256xbf16>, vector<256x128xbf16>, vector<16x128xf32> -> vector<16x128xf32>
      %c0_17 = arith.constant 0 : index
      %c0_18 = arith.constant 0 : index
      %18 = vector.load %arg6[%c0_17, %c0_18] : memref<1x128xf32, #tpu.memory_space<vmem>>, vector<1x128xf32>
      %19 = vector.broadcast %18 : vector<1x128xf32> to vector<16x128xf32>
      %20 = arith.addf %17, %19 : vector<16x128xf32>
      %21 = arith.mulf %20, %20 : vector<16x128xf32>
      %cst_19 = arith.constant dense<0.000000e+00> : vector<16xf32>
      %22 = vector.multi_reduction <add>, %21, %cst_19 [1] : vector<16x128xf32> to vector<16xf32>
      %23 = vector.shape_cast %22 : vector<16xf32> to vector<16x1xf32>
      %24 = math.rsqrt %23 : vector<16x1xf32>
      %25 = vector.broadcast %24 : vector<16x1xf32> to vector<16x128xf32>
      %26 = arith.mulf %20, %25 : vector<16x128xf32>
      %c0_20 = arith.constant 0 : index
      %c0_21 = arith.constant 0 : index
      %27 = vector.load %arg7[%c0_20, %c0_21] : memref<16x128xf32, #tpu.memory_space<vmem>>, vector<16x128xf32>
      tpu.vector_store %arg7[%c0_20, %c0_21], %26 {strides = array<i32>} : memref<16x128xf32, #tpu.memory_space<vmem>>, vector<16x128xf32>,
    } else {
    }
    return
  }
  func.func @transform_0(%arg0: i32, %arg1: i32) -> (i32, i32) {
    %c0_i32 = arith.constant 0 : i32
    return %arg0, %arg1 : i32, i32
  }
  func.func @transform_1(%arg0: i32, %arg1: i32) -> (i32, i32) {
    %c0_i32 = arith.constant 0 : i32
    %c0_i32_0 = arith.constant 0 : i32
    return %arg1, %c0_i32 : i32, i32
  }
  func.func @transform_2(%arg0: i32, %arg1: i32) -> (i32, i32) {
    %c0_i32 = arith.constant 0 : i32
    %c0_i32_0 = arith.constant 0 : i32
    return %arg0, %c0_i32 : i32, i32
  }
  func.func @transform_3(%arg0: i32, %arg1: i32) -> (i32, i32) {
    %c0_i32 = arith.constant 0 : i32
    %c0_i32_0 = arith.constant 0 : i32
    %c0_i32_1 = arith.constant 0 : i32
    return %c0_i32, %c0_i32_0 : i32, i32
  }
  func.func @transform_4(%arg0: i32, %arg1: i32) -> (i32, i32) {
    %c0_i32 = arith.constant 0 : i32
    %c0_i32_0 = arith.constant 0 : i32
    %c0_i32_1 = arith.constant 0 : i32
    return %c0_i32, %c0_i32_0 : i32, i32
  }
  func.func @transform_5(%arg0: i32, %arg1: i32) -> (i32, i32) {
    %c0_i32 = arith.constant 0 : i32
    %c0_i32_0 = arith.constant 0 : i32
    return %arg0, %c0_i32 : i32, i32
  }
}

</mosaic_0001>

<llo_original>
// kernel: tpu_custom_call.1
$region0: #{tpu_custom_call.1}
  #allocation0 [shape = 'u32[]', space=smem, size = 0x4, offset = 0x4, fixed_abs, tag = 'smem constant byte address 0x4 - core index']
  #allocation1 [shape = 'u32[72,128]{1,0:T(1,128)}', space=vmem, size = 0x9000, scoped, tag = 'internal scratch']
  #allocation2 [shape = 'f32[16,128]{1,0:T(8,128)}', space=vmem, size = 0x2000, scoped, tag = 'scratch operand']
  %s0 = inlined_call_operand.hbm [shape: bf16[128,128], index: 0, kind: input, shape index: {}]
  %s1 = inlined_call_operand.hbm [shape: bf16[128,128], index: 1, kind: input, shape index: {}]
  %s2 = inlined_call_operand.hbm [shape: bf16[128,128], index: 2, kind: input, shape index: {}]
  %s3 = inlined_call_operand.hbm [shape: bf16[256,128], index: 3, kind: input, shape index: {}]
  %s4 = inlined_call_operand.vmem [shape: f32[1,128], index: 4, kind: input, shape index: {}]
  %s5 = inlined_call_operand.hbm [shape: f32[128,128], index: 5, kind: output, shape index: {}]
  %s6 = sld [smem:[#allocation0]]
  $region77: #{tpu_custom_call.1} parent=0
    _
  %s8 = ssub.s32 1, %s6
  %s9 = scalar_select 0, %s8, %s6
  $region1: #{tpu_custom_call.1} parent=0
    #allocation3 [shape = 'u8[8192]{0}', space=vmem, size = 0x2000, scoped, tag = 'input window, operand 0']
    #allocation4 [shape = 's32[2]{0}', space=sflag, size = 0x8, scoped, tag = 'scoped memory for tpu_custom_call.1']
    #allocation5 [shape = 's32[2]{0}', space=sflag, size = 0x8, scoped, tag = 'scoped memory for tpu_custom_call.1']
    #allocation6 [shape = 'u8[32768]{0}', space=vmem, size = 0x8000, scoped, tag = 'input window, operand 1, single buffered']
    #allocation7 [shape = 's32[1]{0}', space=sflag, size = 0x4, scoped, tag = 'scoped memory for tpu_custom_call.1']
    #allocation8 [shape = 'u8[8192]{0}', space=vmem, size = 0x2000, scoped, tag = 'input window, operand 2']
    #allocation9 [shape = 'u8[65536]{0}', space=vmem, size = 0x10000, scoped, tag = 'input window, operand 3, single buffered']
    #allocation10 [shape = 'u8[16384]{0}', space=vmem, size = 0x4000, scoped, tag = 'output window, operand 0']
    %10 = vsyncpa [#allocation4], 0
    %s11 = scalar_lea.sflag [#allocation4], 1
    %12 = vsyncpa %s11, 0
    %13 = vsyncpa [#allocation7], 0
    %14 = vsyncpa [#allocation5], 0
    %s15 = scalar_lea.sflag [#allocation5], 1
    %16 = vsyncpa %s15, 0
    loop: start=0, step=1, limit=10
    $region2: #{tpu_custom_call.1} parent=1 // loop_pre_header
      _
    $region3: #{tpu_custom_call.1} parent=1 // loop_header
      %s18 = sphi 0, %s22
      %p19 = scmp.ge.s32.totalorder %s18, 10
      %s25 = sphi 0, %s37
      %s26 = sphi 0, %s33
      %s27 = sphi 0, %s25
      %s28 = sphi 0, %s26
      %s29 = sphi 0, %s27
      %s30 = sphi 0, %s28
      %s42 = sphi 0, %s44
      %s45 = sphi 0, %s42
      %s46 = sphi 0, %s45
      %s62 = sphi 0, %s46
      %s68 = sphi 0, %s70
      %s71 = sphi 0, %s68
      %s72 = sphi 0, %s71
      %s88 = sphi 0, %s72
      %s94 = sphi 0, %s96
      %s97 = sphi 0, %s94
      %s98 = sphi 0, %s97
      %s114 = sphi 0, %s98
      %s118 = sphi 0, %s118
      %s120 = sphi 0, %s118
      %s121 = sphi 0, %s120
      %s135 = sphi 0, %s121
      %s139 = sphi 0, %s139
      %s141 = sphi 0, %s139
      %s142 = sphi 0, %s141
      %s156 = sphi 0, %s142
      %s162 = sphi 0, %s164
      %s165 = sphi 0, %s162
      %s166 = sphi 0, %s165
      %s182 = sphi 0, %s166
    $region4: #{tpu_custom_call.1} parent=1 // loop_header_branch
      %21 = sbr.rel (%p19) target = $region8
    $region5: #{tpu_custom_call.1} parent=1 // loop_body
      %s23 = ssub.s32 %s18, 1
      %s24 = ssub.s32 %s18, 2
      %s31 = sadd.s32 1, %s26
      %p32 = scmp.ge.s32.totalorder %s31, 1
      %s33 = scalar_select %p32, 0, %s31
      %s34 = sadd.s32 1, %s25
      %s35 = scalar_select %p32, %s34, %s25
      %p36 = scmp.ge.s32.totalorder %s35, 8
      %s37 = scalar_select %p36, 0, %s35
      %s38 = ssub.s32 %s25, %s37
      %s39 = ssub.s32 %s26, %s33
      %s40 = sor.u32 %s38, %s39
      %p41 = scmp.eq.s32.totalorder %s40, 0
      %s43 = sadd.s32 %s42, 1
      %s44 = scalar_select %p41, %s42, %s43
      %p47 = pneg %p41
      %p48 = scmp.eq.s32.totalorder %s18, 7
      %p49 = por %p47, %p48
      %p50 = scmp.ne.s32.totalorder %s42, %s45
      %p51 = scmp.eq.s32.totalorder %s18, 0
      %p52 = por %p50, %p51
      %p53 = scmp.ne.s32.totalorder %s42, %s45
      %p54 = scmp.eq.s32.totalorder %s23, 7
      %p55 = por %p53, %p54
      %p56 = scmp.ne.s32.totalorder %s45, %s46
      %p57 = scmp.eq.s32.totalorder %s23, 0
      %p58 = por %p56, %p57
      %p59 = scmp.ne.s32.totalorder %s45, %s46
      %p60 = scmp.eq.s32.totalorder %s24, 7
      %p61 = por %p59, %p60
      %p63 = scmp.ne.s32.totalorder %s46, %s62
      %p64 = scmp.eq.s32.totalorder %s24, 0
      %p65 = por %p63, %p64
      %s66 = ssub.s32 %s26, %s33
      %p67 = scmp.eq.s32.totalorder %s66, 0
      %s69 = sadd.s32 %s68, 1
      %s70 = scalar_select %p67, %s68, %s69
      %p73 = pneg %p67
      %p74 = scmp.eq.s32.totalorder %s18, 7
      %p75 = por %p73, %p74
      %p76 = scmp.ne.s32.totalorder %s68, %s71
      %p77 = scmp.eq.s32.totalorder %s18, 0
      %p78 = por %p76, %p77
      %p79 = scmp.ne.s32.totalorder %s68, %s71
      %p80 = scmp.eq.s32.totalorder %s23, 7
      %p81 = por %p79, %p80
      %p82 = scmp.ne.s32.totalorder %s71, %s72
      %p83 = scmp.eq.s32.totalorder %s23, 0
      %p84 = por %p82, %p83
      %p85 = scmp.ne.s32.totalorder %s71, %s72
      %p86 = scmp.eq.s32.totalorder %s24, 7
      %p87 = por %p85, %p86
      %p89 = scmp.ne.s32.totalorder %s72, %s88
      %p90 = scmp.eq.s32.totalorder %s24, 0
      %p91 = por %p89, %p90
      %s92 = ssub.s32 %s25, %s37
      %p93 = scmp.eq.s32.totalorder %s92, 0
      %s95 = sadd.s32 %s94, 1
      %s96 = scalar_select %p93, %s94, %s95
      %p99 = pneg %p93
      %p100 = scmp.eq.s32.totalorder %s18, 7
      %p101 = por %p99, %p100
      %p102 = scmp.ne.s32.totalorder %s94, %s97
      %p103 = scmp.eq.s32.totalorder %s18, 0
      %p104 = por %p102, %p103
      %p105 = scmp.ne.s32.totalorder %s94, %s97
      %p106 = scmp.eq.s32.totalorder %s23, 7
      %p107 = por %p105, %p106
      %p108 = scmp.ne.s32.totalorder %s97, %s98
      %p109 = scmp.eq.s32.totalorder %s23, 0
      %p110 = por %p108, %p109
      %p111 = scmp.ne.s32.totalorder %s97, %s98
      %p112 = scmp.eq.s32.totalorder %s24, 7
      %p113 = por %p111, %p112
      %p115 = scmp.ne.s32.totalorder %s98, %s114
      %p116 = scmp.eq.s32.totalorder %s24, 0
      %p117 = por %p115, %p116
      %s119 = sadd.s32 %s118, 1
      %p122 = scmp.eq.s32.totalorder %s18, 7
      %p123 = scmp.ne.s32.totalorder %s118, %s120
      %p124 = scmp.eq.s32.totalorder %s18, 0
      %p125 = por %p123, %p124
      %p126 = scmp.ne.s32.totalorder %s118, %s120
      %p127 = scmp.eq.s32.totalorder %s23, 7
      %p128 = por %p126, %p127
      %p129 = scmp.ne.s32.totalorder %s120, %s121
      %p130 = scmp.eq.s32.totalorder %s23, 0
      %p131 = por %p129, %p130
      %p132 = scmp.ne.s32.totalorder %s120, %s121
      %p133 = scmp.eq.s32.totalorder %s24, 7
      %p134 = por %p132, %p133
      %p136 = scmp.ne.s32.totalorder %s121, %s135
      %p137 = scmp.eq.s32.totalorder %s24, 0
      %p138 = por %p136, %p137
      %s140 = sadd.s32 %s139, 1
      %p143 = scmp.eq.s32.totalorder %s18, 7
      %p144 = scmp.ne.s32.totalorder %s139, %s141
      %p145 = scmp.eq.s32.totalorder %s18, 0
      %p146 = por %p144, %p145
      %p147 = scmp.ne.s32.totalorder %s139, %s141
      %p148 = scmp.eq.s32.totalorder %s23, 7
      %p149 = por %p147, %p148
      %p150 = scmp.ne.s32.totalorder %s141, %s142
      %p151 = scmp.eq.s32.totalorder %s23, 0
      %p152 = por %p150, %p151
      %p153 = scmp.ne.s32.totalorder %s141, %s142
      %p154 = scmp.eq.s32.totalorder %s24, 7
      %p155 = por %p153, %p154
      %p157 = scmp.ne.s32.totalorder %s142, %s156
      %p158 = scmp.eq.s32.totalorder %s24, 0
      %p159 = por %p157, %p158
      %s160 = ssub.s32 %s25, %s37
      %p161 = scmp.eq.s32.totalorder %s160, 0
      %s163 = sadd.s32 %s162, 1
      %s164 = scalar_select %p161, %s162, %s163
      %p167 = pneg %p161
      %p168 = scmp.eq.s32.totalorder %s18, 7
      %p169 = por %p167, %p168
      %p170 = scmp.ne.s32.totalorder %s162, %s165
      %p171 = scmp.eq.s32.totalorder %s18, 0
      %p172 = por %p170, %p171
      %p173 = scmp.ne.s32.totalorder %s162, %s165
      %p174 = scmp.eq.s32.totalorder %s23, 7
      %p175 = por %p173, %p174
      %p176 = scmp.ne.s32.totalorder %s165, %s166
      %p177 = scmp.eq.s32.totalorder %s23, 0
      %p178 = por %p176, %p177
      %p179 = scmp.ne.s32.totalorder %s165, %s166
      %p180 = scmp.eq.s32.totalorder %s24, 7
      %p181 = por %p179, %p180
      %p183 = scmp.ne.s32.totalorder %s166, %s182
      %p184 = scmp.eq.s32.totalorder %s24, 0
      %p185 = por %p183, %p184
      %p186 = scmp.le.s32.totalorder 1, %s18
      %p187 = scmp.lt.s32.totalorder %s18, 9
      %p188 = pnand %p186, %p187
      %p189 = pneg %p188
      // Predicated region
      $region9: #{tpu_custom_call.1} parent=5 // pred_check
        _
      $region10: #{tpu_custom_call.1} parent=5 // pred_check_branch
        %191 = sbr.rel (%p188) target = $region12
      $region11: #{tpu_custom_call.1} parent=5 // pred_region
        %s192 = ssub.s32 %s18, 1
        // Predicated region
        $region13: #{tpu_custom_call.1} parent=11 // pred_check
          %p193 = pneg %p84
        $region14: #{tpu_custom_call.1} parent=11 // pred_check_branch
          %195 = sbr.rel (%p193) target = $region16
        $region15: #{tpu_custom_call.1} parent=11 // pred_region
          %s196 = smul.u32 16, %s28
          %198 = vsyncadd [#allocation7], 0
          %s199 = smul.addr %s196, 4
          %s200 = scalar_lea.hbm %s1, %s199
          %s201 = sshll.u32 %s200, 4
          %s202 = int_to_ptr.hbm [resolvable:$true] %s201
          %s203 = sshll.u32 [#allocation6], 4
          %s204 = int_to_ptr.vmem [resolvable:$true] %s203
          %209 = dma.hbm_to_vmem [thread:$0]  %s202, 1024, %s204, [#allocation7], 64, 64, 4
        $region16: #{tpu_custom_call.1} parent=11 // pred_fallthru
          _
        // Predicated region
        $region17: #{tpu_custom_call.1} parent=11 // pred_check
          %p210 = pneg %p131
        $region18: #{tpu_custom_call.1} parent=11 // pred_check_branch
          %212 = sbr.rel (%p210) target = $region20
        $region19: #{tpu_custom_call.1} parent=11 // pred_region
          %214 = vsyncadd [#allocation7], 0
          %s215 = sshll.u32 %s3, 4
          %s216 = int_to_ptr.hbm [resolvable:$true] %s215
          %s217 = sshll.u32 [#allocation9], 4
          %s218 = int_to_ptr.vmem [resolvable:$true] %s217
          %223 = dma.hbm_to_vmem [thread:$0]  %s216, 2048, %s218, [#allocation7], 64, 64, 4
        $region20: #{tpu_custom_call.1} parent=11 // pred_fallthru
          _
        // Predicated region
        $region21: #{tpu_custom_call.1} parent=11 // pred_check
          %p224 = pneg %p152
        $region22: #{tpu_custom_call.1} parent=11 // pred_check_branch
          %226 = sbr.rel (%p224) target = $region24
        $region23: #{tpu_custom_call.1} parent=11 // pred_region
          _
        $region24: #{tpu_custom_call.1} parent=11 // pred_fallthru
          _
      $region12: #{tpu_custom_call.1} parent=5 // pred_fallthru
        _
      %p227 = scmp.lt.s32.totalorder %s18, 8
      // Predicated region
      $region25: #{tpu_custom_call.1} parent=5 // pred_check
        %p228 = pneg %p227
      $region26: #{tpu_custom_call.1} parent=5 // pred_check_branch
        %230 = sbr.rel (%p228) target = $region28
      $region27: #{tpu_custom_call.1} parent=5 // pred_region
        // Predicated region
        $region29: #{tpu_custom_call.1} parent=27 // pred_check
          %p231 = pneg %p52
        $region30: #{tpu_custom_call.1} parent=27 // pred_check_branch
          %233 = sbr.rel (%p231) target = $region32
        $region31: #{tpu_custom_call.1} parent=27 // pred_region
          %s234 = sand.u32 %s18, 1
          %s235 = scalar_lea.sflag [#allocation4], %s234
          %s236 = sand.u32 %s42, 1
          %s237 = smul.addr %s236, 8
          %s238 = scalar_lea.vmem [#allocation3], %s237
          %s239 = smul.u32 2, %s25
          %241 = vsyncadd %s235, 0
          %s242 = sadd.s32 %s26, %s239
          %s243 = smul.addr %s242, 4
          %s244 = scalar_lea.hbm %s0, %s243
          %s245 = sshll.u32 %s244, 4
          %s246 = int_to_ptr.hbm [resolvable:$true] %s245
          %s247 = sshll.u32 %s238, 4
          %s248 = int_to_ptr.vmem [resolvable:$true] %s247
          %253 = dma.hbm_to_vmem [thread:$0]  %s246, 128, %s248, %s235, 64, 64, 4
        $region32: #{tpu_custom_call.1} parent=27 // pred_fallthru
          _
        // Predicated region
        $region33: #{tpu_custom_call.1} parent=27 // pred_check
          %p254 = pneg %p104
        $region34: #{tpu_custom_call.1} parent=27 // pred_check_branch
          %256 = sbr.rel (%p254) target = $region36
        $region35: #{tpu_custom_call.1} parent=27 // pred_region
          %s257 = sand.u32 %s18, 1
          %s258 = scalar_lea.sflag [#allocation4], %s257
          %s259 = sand.u32 %s94, 1
          %s260 = smul.addr %s259, 8
          %s261 = scalar_lea.vmem [#allocation8], %s260
          %s262 = smul.u32 2, %s25
          %264 = vsyncadd %s258, 0
          %s265 = smul.addr %s262, 4
          %s266 = scalar_lea.hbm %s2, %s265
          %s267 = sshll.u32 %s266, 4
          %s268 = int_to_ptr.hbm [resolvable:$true] %s267
          %s269 = sshll.u32 %s261, 4
          %s270 = int_to_ptr.vmem [resolvable:$true] %s269
          %275 = dma.hbm_to_vmem [thread:$0]  %s268, 128, %s270, %s258, 64, 64, 4
        $region36: #{tpu_custom_call.1} parent=27 // pred_fallthru
          _
      $region28: #{tpu_custom_call.1} parent=5 // pred_fallthru
        _
      %p276 = scmp.le.s32.totalorder 1, %s18
      %p277 = scmp.lt.s32.totalorder %s18, 9
      %p278 = pnand %p276, %p277
      %p279 = pneg %p278
      // Predicated region
      $region37: #{tpu_custom_call.1} parent=5 // pred_check
        _
      $region38: #{tpu_custom_call.1} parent=5 // pred_check_branch
        %281 = sbr.rel (%p278) target = $region40
      $region39: #{tpu_custom_call.1} parent=5 // pred_region
        %s282 = ssub.s32 %s18, 1
        %s283 = sand.u32 %s23, 1
        %s284 = scalar_lea.sflag [#allocation4], %s283
        %s285 = sand.u32 %s45, 1
        %s286 = smul.addr %s285, 8
        %s287 = scalar_lea.vmem [#allocation3], %s286
        // Predicated region
        $region41: #{tpu_custom_call.1} parent=39 // pred_check
          %p288 = pneg %p58
        $region42: #{tpu_custom_call.1} parent=39 // pred_check_branch
          %290 = sbr.rel (%p288) target = $region44
        $region43: #{tpu_custom_call.1} parent=39 // pred_region
          %292 = dma.done %s284, 128
        $region44: #{tpu_custom_call.1} parent=39 // pred_fallthru
          _
        // Predicated region
        $region45: #{tpu_custom_call.1} parent=39 // pred_check
          %p293 = pneg %p84
        $region46: #{tpu_custom_call.1} parent=39 // pred_check_branch
          %295 = sbr.rel (%p293) target = $region48
        $region47: #{tpu_custom_call.1} parent=39 // pred_region
          %297 = dma.done [#allocation7], 1024
        $region48: #{tpu_custom_call.1} parent=39 // pred_fallthru
          _
        %s298 = sand.u32 %s23, 1
        %s299 = scalar_lea.sflag [#allocation4], %s298
        %s300 = sand.u32 %s97, 1
        %s301 = smul.addr %s300, 8
        %s302 = scalar_lea.vmem [#allocation8], %s301
        // Predicated region
        $region49: #{tpu_custom_call.1} parent=39 // pred_check
          %p303 = pneg %p110
        $region50: #{tpu_custom_call.1} parent=39 // pred_check_branch
          %305 = sbr.rel (%p303) target = $region52
        $region51: #{tpu_custom_call.1} parent=39 // pred_region
          %307 = dma.done %s299, 128
        $region52: #{tpu_custom_call.1} parent=39 // pred_fallthru
          _
        // Predicated region
        $region53: #{tpu_custom_call.1} parent=39 // pred_check
          %p308 = pneg %p131
        $region54: #{tpu_custom_call.1} parent=39 // pred_check_branch
          %310 = sbr.rel (%p308) target = $region56
        $region55: #{tpu_custom_call.1} parent=39 // pred_region
          %312 = dma.done [#allocation7], 2048
        $region56: #{tpu_custom_call.1} parent=39 // pred_fallthru
          _
        %s313 = sand.u32 %s23, 1
        %s314 = scalar_lea.sflag [#allocation4], %s313
        %s315 = sand.u32 %s45, 1
        %s316 = smul.addr %s315, 8
        %s317 = scalar_lea.vmem [#allocation3], %s316
        %p318 = pneg %p58
        %p319 = pneg %p55
        %p320 = pneg %p84
        %p321 = pneg %p81
        %s322 = sand.u32 %s23, 1
        %s323 = scalar_lea.sflag [#allocation4], %s322
        %s324 = sand.u32 %s97, 1
        %s325 = smul.addr %s324, 8
        %s326 = scalar_lea.vmem [#allocation8], %s325
        %p327 = pneg %p110
        %p328 = pneg %p107
        %p329 = pneg %p131
        %p330 = pneg %p128
        %p331 = pneg %p152
        %p332 = pneg %p149
        %p333 = pneg %p178
        %p334 = pneg %p175
        %s335 = sand.u32 %s165, 1
        %s336 = scalar_lea.sflag [#allocation5], %s335
        %s337 = sand.u32 %s165, 1
        %s338 = smul.addr %s337, 16
        %s339 = scalar_lea.vmem [#allocation10], %s338
        %s340 = smul.u32 2, %s27
        %s341 = smul.u32 16, %s28
        %s342 = smul.u32 2, %s27
        %s343 = smul.u32 2, %s27
        %p344 = scmp.eq.s32.totalorder %s28, 0
        // Predicated region
        $region57: #{tpu_custom_call.1} parent=39 // pred_check
          %p345 = pneg %p344
        $region58: #{tpu_custom_call.1} parent=39 // pred_check_branch
          %347 = sbr.rel (%p345) target = $region60
        $region59: #{tpu_custom_call.1} parent=39 // pred_region
          %348 = vst [vmem:[#allocation2] sm:$0xff] 0.0
          %349 = vst [vmem:[#allocation2 + $0x8] sm:$0xff] 0.0
        $region60: #{tpu_custom_call.1} parent=39 // pred_fallthru
          _
        %v350 = vld [vmem:[#allocation2] sm:$0xff]
        %v351 = vld [vmem:[#allocation2 + $0x8] sm:$0xff]
        %v352 = vld [vmem:[%s287] sm:$0xf]
        %v353 = vld [vmem:[%s287 + $0x4] sm:$0xf]
        %v354 = vld [vmem:[#allocation6] sm:$0xf]
        %v355 = vld [vmem:[#allocation6 + $0x4] sm:$0xf]
        %v356 = vld [vmem:[#allocation6 + $0x8] sm:$0xf]
        %v357 = vld [vmem:[#allocation6 + $0xc] sm:$0xf]
        %v358 = vld [vmem:[#allocation6 + $0x10] sm:$0xf]
        %v359 = vld [vmem:[#allocation6 + $0x14] sm:$0xf]
        %v360 = vld [vmem:[#allocation6 + $0x18] sm:$0xf]
        %v361 = vld [vmem:[#allocation6 + $0x1c] sm:$0xf]
        %v362 = vld [vmem:[#allocation6 + $0x20] sm:$0xf]
        %v363 = vld [vmem:[#allocation6 + $0x24] sm:$0xf]
        %v364 = vld [vmem:[#allocation6 + $0x28] sm:$0xf]
        %v365 = vld [vmem:[#allocation6 + $0x2c] sm:$0xf]
        %v366 = vld [vmem:[#allocation6 + $0x30] sm:$0xf]
        %v367 = vld [vmem:[#allocation6 + $0x34] sm:$0xf]
        %v368 = vld [vmem:[#allocation6 + $0x38] sm:$0xf]
        %v369 = vld [vmem:[#allocation6 + $0x3c] sm:$0xf]
        %v372 = vunpack.c.l.b16 %v352
        %v373 = vunpack.c.l.b16 %v353
        %v374 = vpack.c.b16 %v373, %v372
        %v392 = vunpack.c.l.b16 %v354
        %v393 = vunpack.c.l.b16 %v355
        %v394 = vunpack.c.l.b16 %v356
        %v395 = vunpack.c.l.b16 %v357
        %v396 = vunpack.c.l.b16 %v358
        %v397 = vunpack.c.l.b16 %v359
        %v398 = vunpack.c.l.b16 %v360
        %v399 = vunpack.c.l.b16 %v361
        %v400 = vunpack.c.l.b16 %v362
        %v401 = vunpack.c.l.b16 %v363
        %v402 = vunpack.c.l.b16 %v364
        %v403 = vunpack.c.l.b16 %v365
        %v404 = vunpack.c.l.b16 %v366
        %v405 = vunpack.c.l.b16 %v367
        %v406 = vunpack.c.l.b16 %v368
        %v407 = vunpack.c.l.b16 %v369
        %v408 = vpack.c.b16 %v393, %v392
        %v409 = vpack.c.b16 %v395, %v394
        %v410 = vpack.c.b16 %v397, %v396
        %v411 = vpack.c.b16 %v399, %v398
        %v412 = vpack.c.b16 %v401, %v400
        %v413 = vpack.c.b16 %v403, %v402
        %v414 = vpack.c.b16 %v405, %v404
        %v415 = vpack.c.b16 %v407, %v406
        %424 = vmatpush.bf16.msra.mxu0 %v415
        %425 = vmatpush.bf16.msra.mxu0 %v414
        %426 = vmatpush.bf16.msra.mxu0 %v413
        %427 = vmatpush.bf16.msra.mxu0 %v412
        %428 = vmatpush.bf16.msra.mxu0 %v411
        %429 = vmatpush.bf16.msra.mxu0 %v410
        %430 = vmatpush.bf16.msra.mxu0 %v409
        %431 = vmatpush.bf16.msra.mxu0 %v408
        %432 = vmatmul.bf16.gmra.mxu0 %v374
        %v433 = vpop.f32.mrf.mxu0
        %v434 = vadd.f32 0.0, %v433
        %v435 = vpop.f32.mrf.mxu0
        %v436 = vadd.f32 0.0, %v435
        %437 = vdwg.mxu0
        %v438 = vadd.f32 %v350, %v434
        %v439 = vadd.f32 %v351, %v436
        %440 = vst [vmem:[#allocation2] sm:$0xff] %v438
        %441 = vst [vmem:[#allocation2 + $0x8] sm:$0xff] %v439
        // Predicated region
        $region61: #{tpu_custom_call.1} parent=39 // pred_check
          %p442 = pneg %p344
        $region62: #{tpu_custom_call.1} parent=39 // pred_check_branch
          %444 = sbr.rel (%p442) target = $region64
        $region63: #{tpu_custom_call.1} parent=39 // pred_region
          %v445 = vld [vmem:[%s302] sm:$0xf]
          %v446 = vld [vmem:[%s302 + $0x4] sm:$0xf]
          %v447 = vld [vmem:[#allocation2] sm:$0xff]
          %v448 = vld [vmem:[#allocation2 + $0x8] sm:$0xff]
          %v449 = vpack.c.bf16 %v447, %v447
          %v450 = vpack.c.bf16 %v448, %v448
          %v453 = vunpack.c.l.b16 %v445
          %v454 = vunpack.c.l.b16 %v446
          %v455 = vpack.c.b16 %v454, %v453
          %v459 = vunpack.c.l.b16 %v449
          %v460 = vunpack.c.l.b16 %v450
          %v461 = vpack.c.b16 %v460, %v459
          %v463 = vld [vmem:[#allocation9] sm:$0xf]
          %v464 = vld [vmem:[#allocation9 + $0x4] sm:$0xf]
          %v465 = vld [vmem:[#allocation9 + $0x8] sm:$0xf]
          %v466 = vld [vmem:[#allocation9 + $0xc] sm:$0xf]
          %v467 = vld [vmem:[#allocation9 + $0x10] sm:$0xf]
          %v468 = vld [vmem:[#allocation9 + $0x14] sm:$0xf]
          %v469 = vld [vmem:[#allocation9 + $0x18] sm:$0xf]
          %v470 = vld [vmem:[#allocation9 + $0x1c] sm:$0xf]
          %v471 = vld [vmem:[#allocation9 + $0x20] sm:$0xf]
          %v472 = vld [vmem:[#allocation9 + $0x24] sm:$0xf]
          %v473 = vld [vmem:[#allocation9 + $0x28] sm:$0xf]
          %v474 = vld [vmem:[#allocation9 + $0x2c] sm:$0xf]
          %v475 = vld [vmem:[#allocation9 + $0x30] sm:$0xf]
          %v476 = vld [vmem:[#allocation9 + $0x34] sm:$0xf]
          %v477 = vld [vmem:[#allocation9 + $0x38] sm:$0xf]
          %v478 = vld [vmem:[#allocation9 + $0x3c] sm:$0xf]
          %v479 = vld [vmem:[#allocation9 + $0x40] sm:$0xf]
          %v480 = vld [vmem:[#allocation9 + $0x44] sm:$0xf]
          %v481 = vld [vmem:[#allocation9 + $0x48] sm:$0xf]
          %v482 = vld [vmem:[#allocation9 + $0x4c] sm:$0xf]
          %v483 = vld [vmem:[#allocation9 + $0x50] sm:$0xf]
          %v484 = vld [vmem:[#allocation9 + $0x54] sm:$0xf]
          %v485 = vld [vmem:[#allocation9 + $0x58] sm:$0xf]
          %v486 = vld [vmem:[#allocation9 + $0x5c] sm:$0xf]
          %v487 = vld [vmem:[#allocation9 + $0x60] sm:$0xf]
          %v488 = vld [vmem:[#allocation9 + $0x64] sm:$0xf]
          %v489 = vld [vmem:[#allocation9 + $0x68] sm:$0xf]
          %v490 = vld [vmem:[#allocation9 + $0x6c] sm:$0xf]
          %v491 = vld [vmem:[#allocation9 + $0x70] sm:$0xf]
          %v492 = vld [vmem:[#allocation9 + $0x74] sm:$0xf]
          %v493 = vld [vmem:[#allocation9 + $0x78] sm:$0xf]
          %v494 = vld [vmem:[#allocation9 + $0x7c] sm:$0xf]
          %v495 = vld [vmem:[%s4] sm:$0x1]
          %v497 = vperm.slane %v495, 0
          %v531 = vunpack.c.l.b16 %v463
          %v532 = vunpack.c.l.b16 %v464
          %v533 = vunpack.c.l.b16 %v465
          %v534 = vunpack.c.l.b16 %v466
          %v535 = vunpack.c.l.b16 %v467
          %v536 = vunpack.c.l.b16 %v468
          %v537 = vunpack.c.l.b16 %v469
          %v538 = vunpack.c.l.b16 %v470
          %v539 = vunpack.c.l.b16 %v471
          %v540 = vunpack.c.l.b16 %v472
          %v541 = vunpack.c.l.b16 %v473
          %v542 = vunpack.c.l.b16 %v474
          %v543 = vunpack.c.l.b16 %v475
          %v544 = vunpack.c.l.b16 %v476
          %v545 = vunpack.c.l.b16 %v477
          %v546 = vunpack.c.l.b16 %v478
          %v547 = vunpack.c.l.b16 %v479
          %v548 = vunpack.c.l.b16 %v480
          %v549 = vunpack.c.l.b16 %v481
          %v550 = vunpack.c.l.b16 %v482
          %v551 = vunpack.c.l.b16 %v483
          %v552 = vunpack.c.l.b16 %v484
          %v553 = vunpack.c.l.b16 %v485
          %v554 = vunpack.c.l.b16 %v486
          %v555 = vunpack.c.l.b16 %v487
          %v556 = vunpack.c.l.b16 %v488
          %v557 = vunpack.c.l.b16 %v489
          %v558 = vunpack.c.l.b16 %v490
          %v559 = vunpack.c.l.b16 %v491
          %v560 = vunpack.c.l.b16 %v492
          %v561 = vunpack.c.l.b16 %v493
          %v562 = vunpack.c.l.b16 %v494
          %v563 = vpack.c.b16 %v532, %v531
          %v564 = vpack.c.b16 %v534, %v533
          %v565 = vpack.c.b16 %v536, %v535
          %v566 = vpack.c.b16 %v538, %v537
          %v567 = vpack.c.b16 %v540, %v539
          %v568 = vpack.c.b16 %v542, %v541
          %v569 = vpack.c.b16 %v544, %v543
          %v570 = vpack.c.b16 %v546, %v545
          %v571 = vpack.c.b16 %v548, %v547
          %v572 = vpack.c.b16 %v550, %v549
          %v573 = vpack.c.b16 %v552, %v551
          %v574 = vpack.c.b16 %v554, %v553
          %v575 = vpack.c.b16 %v556, %v555
          %v576 = vpack.c.b16 %v558, %v557
          %v577 = vpack.c.b16 %v560, %v559
          %v578 = vpack.c.b16 %v562, %v561
          %595 = vmatpush.bf16.msra.mxu0 %v570
          %596 = vmatpush.bf16.msra.mxu0 %v569
          %597 = vmatpush.bf16.msra.mxu0 %v568
          %598 = vmatpush.bf16.msra.mxu0 %v567
          %599 = vmatpush.bf16.msra.mxu0 %v566
          %600 = vmatpush.bf16.msra.mxu0 %v565
          %601 = vmatpush.bf16.msra.mxu0 %v564
          %602 = vmatpush.bf16.msra.mxu0 %v563
          %603 = vmatmul.bf16.gmra.mxu0 %v455
          %v604 = vpop.f32.mrf.mxu0
          %v605 = vadd.f32 %v497, %v604
          %v606 = vpop.f32.mrf.mxu0
          %v607 = vadd.f32 %v497, %v606
          %608 = vdwg.mxu0
          %609 = vmatpush.bf16.msra.mxu0 %v578
          %610 = vmatpush.bf16.msra.mxu0 %v577
          %611 = vmatpush.bf16.msra.mxu0 %v576
          %612 = vmatpush.bf16.msra.mxu0 %v575
          %613 = vmatpush.bf16.msra.mxu0 %v574
          %614 = vmatpush.bf16.msra.mxu0 %v573
          %615 = vmatpush.bf16.msra.mxu0 %v572
          %616 = vmatpush.bf16.msra.mxu0 %v571
          %617 = vmatmul.bf16.gmra.mxu0 %v461
          %v618 = vpop.f32.mrf.mxu0
          %v619 = vadd.f32 %v605, %v618
          %v620 = vpop.f32.mrf.mxu0
          %v621 = vadd.f32 %v607, %v620
          %622 = vdwg.mxu0
          %v623 = vmul.f32 %v619, %v619
          %v624 = vmul.f32 %v621, %v621
          %625 = vadd.xlane.f32.xlu0 %v623
          %v626 = vpop.xlane.xlu0 %625
          %627 = vadd.xlane.f32.xlu0 %v624
          %v628 = vpop.xlane.xlu0 %627
          %v629 = vrsqrt.pop %v626
          %v630 = vmul.f32 %v629, %v626
          %v631 = vmul.f32 %v630, %v629
          %v632 = vmul.f32 0.5, %v631
          %v633 = vsub.f32 1.5, %v632
          %v634 = vmul.f32 %v629, %v633
          %vm635 = vweird.f32 %v626
          %vm636 = vweird.f32 %v629
          %vm637 = vmor %vm635, %vm636
          %v638 = vsel %vm637, %v629, %v634
          %v639 = vrsqrt.pop %v628
          %v640 = vmul.f32 %v639, %v628
          %v641 = vmul.f32 %v640, %v639
          %v642 = vmul.f32 0.5, %v641
          %v643 = vsub.f32 1.5, %v642
          %v644 = vmul.f32 %v639, %v643
          %vm645 = vweird.f32 %v628
          %vm646 = vweird.f32 %v639
          %vm647 = vmor %vm645, %vm646
          %v648 = vsel %vm647, %v639, %v644
          %v649 = vmul.f32 %v619, %v638
          %v650 = vmul.f32 %v621, %v648
          %651 = vst [vmem:[%s339] sm:$0xff] %v649
          %652 = vst [vmem:[%s339 + $0x8] sm:$0xff] %v650
        $region64: #{tpu_custom_call.1} parent=39 // pred_fallthru
          _
        %s653 = sand.u32 %s165, 1
        %s654 = scalar_lea.sflag [#allocation5], %s653
        %s655 = sand.u32 %s165, 1
        %s656 = smul.addr %s655, 16
        %s657 = scalar_lea.vmem [#allocation10], %s656
        // Predicated region
        $region65: #{tpu_custom_call.1} parent=39 // pred_check
          %p658 = pneg %p175
        $region66: #{tpu_custom_call.1} parent=39 // pred_check_branch
          %660 = sbr.rel (%p658) target = $region68
        $region67: #{tpu_custom_call.1} parent=39 // pred_region
          %s661 = smul.u32 2, %s27
          %663 = vsyncadd %s654, 0
          %s664 = smul.addr %s661, 8
          %s665 = scalar_lea.hbm %s5, %s664
          %s666 = sshll.u32 %s657, 4
          %s667 = int_to_ptr.vmem [resolvable:$true] %s666
          %s668 = sshll.u32 %s665, 4
          %s669 = int_to_ptr.hbm [resolvable:$true] %s668
          %674 = dma.vmem_to_hbm [thread:$0]  %s667, 256, %s669, %s654, 128, 128, 8
        $region68: #{tpu_custom_call.1} parent=39 // pred_fallthru
          _
      $region40: #{tpu_custom_call.1} parent=5 // pred_fallthru
        _
      %p675 = scmp.le.s32.totalorder 2, %s18
      // Predicated region
      $region69: #{tpu_custom_call.1} parent=5 // pred_check
        %p676 = pneg %p675
      $region70: #{tpu_custom_call.1} parent=5 // pred_check_branch
        %678 = sbr.rel (%p676) target = $region72
      $region71: #{tpu_custom_call.1} parent=5 // pred_region
        %s679 = ssub.s32 %s18, 2
        // Predicated region
        $region73: #{tpu_custom_call.1} parent=71 // pred_check
          %p680 = pneg %p181
        $region74: #{tpu_custom_call.1} parent=71 // pred_check_branch
          %682 = sbr.rel (%p680) target = $region76
        $region75: #{tpu_custom_call.1} parent=71 // pred_region
          %s683 = sand.u32 %s166, 1
          %s684 = scalar_lea.sflag [#allocation5], %s683
          %s685 = sand.u32 %s166, 1
          %s686 = smul.addr %s685, 16
          %s687 = scalar_lea.vmem [#allocation10], %s686
          %689 = dma.done %s684, 256
        $region76: #{tpu_custom_call.1} parent=71 // pred_fallthru
          _
      $region72: #{tpu_custom_call.1} parent=5 // pred_fallthru
        _
    $region6: #{tpu_custom_call.1} parent=1 // loop_footer
      %s22 = sadd.s32 1, %s18
    $region7: #{tpu_custom_call.1} parent=1 // loop_footer_branch
      %17 = sbr.rel target = $region3
    $region8: #{tpu_custom_call.1} parent=1 // loop_exit
      _
    %690 = vsyncpa [#allocation4], 1
    %s691 = scalar_lea.sflag [#allocation4], 1
    %692 = vsyncpa %s691, 1
    %693 = vsyncpa [#allocation7], 1
    %694 = vsyncpa [#allocation5], 1
    %s695 = scalar_lea.sflag [#allocation5], 1
    %696 = vsyncpa %s695, 1

</llo_original>
